<compile_context>
chip_gen: v7x
topology: tpu7x:2x2x1
jax: 0.10.0
libtpu: 0.0.40
codegen_flags: <defaults>
</compile_context>

<pallas_src>
import functools

import jax
import jax.numpy as jnp
import numpy as np
from jax.experimental import pallas as pl
from jax.experimental.pallas import tpu as pltpu


def _shift_kernel(x_ref, o_ref, *, mode):
    x = x_ref[...].astype(jnp.float32)               # (bc_blk, H, W)

    if mode == "max":
        bias_h = jnp.max(x, axis=2, keepdims=True)   # pool over W -> (bc, H, 1)
        bias_w = jnp.max(x, axis=1, keepdims=True)   # pool over H -> (bc, 1, W)
    else:  # "avg"
        bias_h = jnp.mean(x, axis=2, keepdims=True)
        bias_w = jnp.mean(x, axis=1, keepdims=True)

    # Numerically-stable softmax numerators (exp on the EUP).
    eh = jnp.exp(bias_h - jnp.max(bias_h, axis=1, keepdims=True))   # (bc, H, 1)
    ew = jnp.exp(bias_w - jnp.max(bias_w, axis=2, keepdims=True))   # (bc, 1, W)

    # Fold both softmax denominators into one reciprocal per channel:
    #   (eh/sum_h) * (ew/sum_w) == eh * ew * 1/(sum_h * sum_w)
    se_h = jnp.sum(eh, axis=1, keepdims=True)                       # (bc, 1, 1)
    se_w = jnp.sum(ew, axis=2, keepdims=True)                       # (bc, 1, 1)
    inv = 1.0 / (se_h * se_w)                                       # (bc, 1, 1)

    # (H,1) @ (1,W) batched matmul == rank-1 outer product == broadcast multiply.
    o_ref[...] = ((eh * ew) * inv).astype(o_ref.dtype)


def shift_pallas(x, mode="max"):
    if mode not in ("max", "avg"):
        raise ValueError("Invalid mode! mode must be 'max' or 'avg'.")
    assert x.ndim == 4, "expected (B, C, H, W)"
    B, C, H, W = x.shape
    BC = B * C

    # Free, contiguous reshape: merge batch & channel into one tiled axis.
    x2 = x.reshape(BC, H, W)

    itemsize = jnp.dtype(x.dtype).itemsize
    plane_bytes = H * W * itemsize
    target_block_bytes = 2 << 20                       # ~2 MiB per input block
    bc_blk = int(max(1, min(BC, target_block_bytes // max(1, plane_bytes))))

    grid = (pl.cdiv(BC, bc_blk),)
    kernel = functools.partial(_shift_kernel, mode=mode)

    cost = pl.CostEstimate(
        flops=int(5 * BC * H * W),
        transcendentals=int(BC * (H + W)),
        bytes_accessed=int(2 * BC * H * W * itemsize),
    )

    out = pl.pallas_call(
        kernel,
        out_shape=jax.ShapeDtypeStruct((BC, H, W), x.dtype),
        grid=grid,
        in_specs=[pl.BlockSpec((bc_blk, H, W), lambda i: (i, 0, 0))],
        out_specs=pl.BlockSpec((bc_blk, H, W), lambda i: (i, 0, 0)),
        compiler_params=pltpu.CompilerParams(
            dimension_semantics=("parallel",)),
        cost_estimate=cost,
    )(x2)

    return out.reshape(B, C, H, W)


# ---------------- pure-JAX reference (same math as the PyTorch module) ----------------
def _shift_ref(x, mode="max"):
    x = x.astype(jnp.float32)
    if mode == "max":
        bh = jnp.max(x, axis=3, keepdims=True)
        bw = jnp.max(x, axis=2, keepdims=True)
    else:
        bh = jnp.mean(x, axis=3, keepdims=True)
        bw = jnp.mean(x, axis=2, keepdims=True)
    ph = jax.nn.softmax(bh, axis=2)
    pw = jax.nn.softmax(bw, axis=3)
    return jnp.matmul(ph, pw)


if __name__ == "__main__":
    key = jax.random.PRNGKey(0)
    B, C, H, W = 2, 4, 16, 16
    x = jax.random.normal(key, (B, C, H, W), dtype=jnp.float32)

    for mode in ("max", "avg"):
        out = shift_pallas(x, mode=mode)
        jax.block_until_ready(out)
        ref = _shift_ref(x, mode=mode)
        np.testing.assert_allclose(np.asarray(out), np.asarray(ref),
                                   rtol=1e-4, atol=1e-6)

    print("KERNEL_OK")
</pallas_src>

<mosaic_0001>
module attributes {stable_mosaic.version = 11 : i64} {
  func.func @_shift_kernel(%arg0: i32, %arg1: memref<8x16x16xf32, #tpu.memory_space<vmem>>, %arg2: memref<8x16x16xf32, #tpu.memory_space<vmem>>) attributes {dimension_semantics = [#tpu.dimension_semantics<parallel>], iteration_bounds = array<i64: 1>, scalar_prefetch = 0 : i64, scratch_operands = 0 : i64, tpu.core_type = #tpu.core_type<tc>, window_params = [{transform_indices = @transform_0, window_bounds = array<i64: 8, 16, 16>}, {transform_indices = @transform_1, window_bounds = array<i64: 8, 16, 16>}]} {
    %c0 = arith.constant 0 : index
    %c0_0 = arith.constant 0 : index
    %c0_1 = arith.constant 0 : index
    %0 = vector.load %arg1[%c0, %c0_0, %c0_1] : memref<8x16x16xf32, #tpu.memory_space<vmem>>, vector<8x16x16xf32>
    %cst = arith.constant dense<0xFF800000> : vector<8x16xf32>
    %1 = vector.multi_reduction <maximumf>, %0, %cst [2] : vector<8x16x16xf32> to vector<8x16xf32>
    %2 = vector.shape_cast %1 : vector<8x16xf32> to vector<8x16x1xf32>
    %cst_2 = arith.constant dense<0xFF800000> : vector<8x16xf32>
    %3 = vector.multi_reduction <maximumf>, %0, %cst_2 [1] : vector<8x16x16xf32> to vector<8x16xf32>
    %4 = vector.shape_cast %3 : vector<8x16xf32> to vector<8x1x16xf32>
    %cst_3 = arith.constant dense<0xFF800000> : vector<8x1xf32>
    %5 = vector.multi_reduction <maximumf>, %2, %cst_3 [1] : vector<8x16x1xf32> to vector<8x1xf32>
    %6 = vector.shape_cast %5 : vector<8x1xf32> to vector<8x1x1xf32>
    %7 = vector.broadcast %6 : vector<8x1x1xf32> to vector<8x16x1xf32>
    %8 = arith.subf %2, %7 : vector<8x16x1xf32>
    %9 = math.exp %8 : vector<8x16x1xf32>
    %cst_4 = arith.constant dense<0xFF800000> : vector<8x1xf32>
    %10 = vector.multi_reduction <maximumf>, %4, %cst_4 [2] : vector<8x1x16xf32> to vector<8x1xf32>
    %11 = vector.shape_cast %10 : vector<8x1xf32> to vector<8x1x1xf32>
    %12 = vector.broadcast %11 : vector<8x1x1xf32> to vector<8x1x16xf32>
    %13 = arith.subf %4, %12 : vector<8x1x16xf32>
    %14 = math.exp %13 : vector<8x1x16xf32>
    %cst_5 = arith.constant dense<0.000000e+00> : vector<8x1xf32>
    %15 = vector.multi_reduction <add>, %9, %cst_5 [1] : vector<8x16x1xf32> to vector<8x1xf32>
    %16 = vector.shape_cast %15 : vector<8x1xf32> to vector<8x1x1xf32>
    %cst_6 = arith.constant dense<0.000000e+00> : vector<8x1xf32>
    %17 = vector.multi_reduction <add>, %14, %cst_6 [2] : vector<8x1x16xf32> to vector<8x1xf32>
    %18 = vector.shape_cast %17 : vector<8x1xf32> to vector<8x1x1xf32>
    %19 = arith.mulf %16, %18 : vector<8x1x1xf32>
    %cst_7 = arith.constant 1.000000e+00 : f32
    %20 = vector.broadcast %cst_7 : f32 to vector<8x1x1xf32>
    %21 = arith.divf %20, %19 : vector<8x1x1xf32>
    %22 = vector.broadcast %9 : vector<8x16x1xf32> to vector<8x16x16xf32>
    %23 = vector.broadcast %14 : vector<8x1x16xf32> to vector<8x16x16xf32>
    %24 = arith.mulf %22, %23 : vector<8x16x16xf32>
    %25 = vector.broadcast %21 : vector<8x1x1xf32> to vector<8x16x16xf32>
    %26 = arith.mulf %24, %25 : vector<8x16x16xf32>
    %c0_8 = arith.constant 0 : index
    %c0_9 = arith.constant 0 : index
    %c0_10 = arith.constant 0 : index
    %27 = vector.load %arg2[%c0_8, %c0_9, %c0_10] : memref<8x16x16xf32, #tpu.memory_space<vmem>>, vector<8x16x16xf32>
    tpu.vector_store %arg2[%c0_8, %c0_9, %c0_10], %26 {strides = array<i32>} : memref<8x16x16xf32, #tpu.memory_space<vmem>>, vector<8x16x16xf32>,
    return
  }
  func.func @transform_0(%arg0: i32) -> (i32, i32, i32) {
    %c0_i32 = arith.constant 0 : i32
    %c0_i32_0 = arith.constant 0 : i32
    %c0_i32_1 = arith.constant 0 : i32
    return %arg0, %c0_i32, %c0_i32_0 : i32, i32, i32
  }
  func.func @transform_1(%arg0: i32) -> (i32, i32, i32) {
    %c0_i32 = arith.constant 0 : i32
    %c0_i32_0 = arith.constant 0 : i32
    %c0_i32_1 = arith.constant 0 : i32
    return %arg0, %c0_i32, %c0_i32_0 : i32, i32, i32
  }
}

</mosaic_0001>

<llo_original>
// kernel: tpu_custom_call.1
$region0: #{tpu_custom_call.1}
  #allocation0 [shape = 'u32[]', space=smem, size = 0x4, offset = 0x4, fixed_abs, tag = 'smem constant byte address 0x4 - core index']
  #allocation1 [shape = 'u32[144,128]{1,0:T(1,128)}', space=vmem, size = 0x12000, scoped, tag = 'internal scratch']
  %s0 = inlined_call_operand.hbm [shape: f32[8,16,16], index: 0, kind: input, shape index: {}]
  %s1 = inlined_call_operand.hbm [shape: f32[8,16,16], index: 1, kind: output, shape index: {}]
  %s2 = sld [smem:[#allocation0]]
  $region18: #{tpu_custom_call.1} parent=0
    _
  %s4 = ssub.s32 1, %s2
  %s5 = scalar_select 0, %s4, %s2
  $region1: #{tpu_custom_call.1} parent=0
    #allocation2 [shape = 'u8[65536]{0}', space=vmem, size = 0x10000, scoped, tag = 'input window, operand 0, single buffered']
    #allocation3 [shape = 's32[1]{0}', space=sflag, size = 0x4, scoped, tag = 'scoped memory for tpu_custom_call.1']
    #allocation4 [shape = 's32[1]{0}', space=sflag, size = 0x4, scoped, tag = 'scoped memory for tpu_custom_call.1']
    #allocation5 [shape = 'u8[65536]{0}', space=vmem, size = 0x10000, scoped, tag = 'output window, operand 0, single buffered']
    %6 = vsyncpa [#allocation3], 0
    %7 = vsyncpa [#allocation4], 0
    // Predicated region
    $region2: #{tpu_custom_call.1} parent=1 // pred_check
      _
    $region3: #{tpu_custom_call.1} parent=1 // pred_check_branch
      %9 = sbr.rel (0) target = $region5
    $region4: #{tpu_custom_call.1} parent=1 // pred_region
      %s11 = ssub.s32 2048, 2048
      %12 = vsyncadd [#allocation3], %s11
      %s13 = sshll.u32 [#allocation2], 4
      %s14 = int_to_ptr.vmem [resolvable:$true] %s13
      %19 = dma.hbm_to_vmem [thread:$0]  %s0, 2048, %s14, [#allocation3], 128, 128, 8
    $region5: #{tpu_custom_call.1} parent=1 // pred_fallthru
      _
    // Predicated region
    $region6: #{tpu_custom_call.1} parent=1 // pred_check
      _
    $region7: #{tpu_custom_call.1} parent=1 // pred_check_branch
      %21 = sbr.rel (0) target = $region9
    $region8: #{tpu_custom_call.1} parent=1 // pred_region
      %22 = dma.done [#allocation3], 2048
    $region9: #{tpu_custom_call.1} parent=1 // pred_fallthru
      _
    %v23 = vld [vmem:[#allocation2] sm:$0xff]
    %v24 = vld [vmem:[#allocation2 + $0x8] sm:$0xff]
    %v25 = vld [vmem:[#allocation2 + $0x10] sm:$0xff]
    %v26 = vld [vmem:[#allocation2 + $0x18] sm:$0xff]
    %v27 = vld [vmem:[#allocation2 + $0x20] sm:$0xff]
    %v28 = vld [vmem:[#allocation2 + $0x28] sm:$0xff]
    %v29 = vld [vmem:[#allocation2 + $0x30] sm:$0xff]
    %v30 = vld [vmem:[#allocation2 + $0x38] sm:$0xff]
    %v31 = vld [vmem:[#allocation2 + $0x40] sm:$0xff]
    %v32 = vld [vmem:[#allocation2 + $0x48] sm:$0xff]
    %v33 = vld [vmem:[#allocation2 + $0x50] sm:$0xff]
    %v34 = vld [vmem:[#allocation2 + $0x58] sm:$0xff]
    %v35 = vld [vmem:[#allocation2 + $0x60] sm:$0xff]
    %v36 = vld [vmem:[#allocation2 + $0x68] sm:$0xff]
    %v37 = vld [vmem:[#allocation2 + $0x70] sm:$0xff]
    %v38 = vld [vmem:[#allocation2 + $0x78] sm:$0xff]
    %vm39 = vcmask 130048
    %v40 = vsel %vm39, %v23, -inf
    %41 = vmax.xlane.f32.xlu0 %v40
    %v42 = vpop.xlane.xlu0 %41
    %v43 = vsel %vm39, %v24, -inf
    %44 = vmax.xlane.f32.xlu0 %v43
    %v45 = vpop.xlane.xlu0 %44
    %v46 = vsel %vm39, %v25, -inf
    %47 = vmax.xlane.f32.xlu0 %v46
    %v48 = vpop.xlane.xlu0 %47
    %v49 = vsel %vm39, %v26, -inf
    %50 = vmax.xlane.f32.xlu0 %v49
    %v51 = vpop.xlane.xlu0 %50
    %v52 = vsel %vm39, %v27, -inf
    %53 = vmax.xlane.f32.xlu0 %v52
    %v54 = vpop.xlane.xlu0 %53
    %v55 = vsel %vm39, %v28, -inf
    %56 = vmax.xlane.f32.xlu0 %v55
    %v57 = vpop.xlane.xlu0 %56
    %v58 = vsel %vm39, %v29, -inf
    %59 = vmax.xlane.f32.xlu0 %v58
    %v60 = vpop.xlane.xlu0 %59
    %v61 = vsel %vm39, %v30, -inf
    %62 = vmax.xlane.f32.xlu0 %v61
    %v63 = vpop.xlane.xlu0 %62
    %v64 = vsel %vm39, %v31, -inf
    %65 = vmax.xlane.f32.xlu0 %v64
    %v66 = vpop.xlane.xlu0 %65
    %v67 = vsel %vm39, %v32, -inf
    %68 = vmax.xlane.f32.xlu0 %v67
    %v69 = vpop.xlane.xlu0 %68
    %v70 = vsel %vm39, %v33, -inf
    %71 = vmax.xlane.f32.xlu0 %v70
    %v72 = vpop.xlane.xlu0 %71
    %v73 = vsel %vm39, %v34, -inf
    %74 = vmax.xlane.f32.xlu0 %v73
    %v75 = vpop.xlane.xlu0 %74
    %v76 = vsel %vm39, %v35, -inf
    %77 = vmax.xlane.f32.xlu0 %v76
    %v78 = vpop.xlane.xlu0 %77
    %v79 = vsel %vm39, %v36, -inf
    %80 = vmax.xlane.f32.xlu0 %v79
    %v81 = vpop.xlane.xlu0 %80
    %v82 = vsel %vm39, %v37, -inf
    %83 = vmax.xlane.f32.xlu0 %v82
    %v84 = vpop.xlane.xlu0 %83
    %v85 = vsel %vm39, %v38, -inf
    %86 = vmax.xlane.f32.xlu0 %v85
    %v87 = vpop.xlane.xlu0 %86
    %v88 = vmax.f32 %v40, %v43
    %v89 = vrot.slane %v88, 4
    %v90 = vmax.f32 %v88, %v89
    %v91 = vrot.slane %v90, 2
    %v92 = vmax.f32 %v90, %v91
    %v93 = vrot.slane %v92, 1
    %v94 = vmax.f32 %v92, %v93
    %v95 = vmax.f32 %v46, %v49
    %v96 = vrot.slane %v95, 4
    %v97 = vmax.f32 %v95, %v96
    %v98 = vrot.slane %v97, 2
    %v99 = vmax.f32 %v97, %v98
    %v100 = vrot.slane %v99, 1
    %v101 = vmax.f32 %v99, %v100
    %v102 = vmax.f32 %v52, %v55
    %v103 = vrot.slane %v102, 4
    %v104 = vmax.f32 %v102, %v103
    %v105 = vrot.slane %v104, 2
    %v106 = vmax.f32 %v104, %v105
    %v107 = vrot.slane %v106, 1
    %v108 = vmax.f32 %v106, %v107
    %v109 = vmax.f32 %v58, %v61
    %v110 = vrot.slane %v109, 4
    %v111 = vmax.f32 %v109, %v110
    %v112 = vrot.slane %v111, 2
    %v113 = vmax.f32 %v111, %v112
    %v114 = vrot.slane %v113, 1
    %v115 = vmax.f32 %v113, %v114
    %v116 = vmax.f32 %v64, %v67
    %v117 = vrot.slane %v116, 4
    %v118 = vmax.f32 %v116, %v117
    %v119 = vrot.slane %v118, 2
    %v120 = vmax.f32 %v118, %v119
    %v121 = vrot.slane %v120, 1
    %v122 = vmax.f32 %v120, %v121
    %v123 = vmax.f32 %v70, %v73
    %v124 = vrot.slane %v123, 4
    %v125 = vmax.f32 %v123, %v124
    %v126 = vrot.slane %v125, 2
    %v127 = vmax.f32 %v125, %v126
    %v128 = vrot.slane %v127, 1
    %v129 = vmax.f32 %v127, %v128
    %v130 = vmax.f32 %v76, %v79
    %v131 = vrot.slane %v130, 4
    %v132 = vmax.f32 %v130, %v131
    %v133 = vrot.slane %v132, 2
    %v134 = vmax.f32 %v132, %v133
    %v135 = vrot.slane %v134, 1
    %v136 = vmax.f32 %v134, %v135
    %v137 = vmax.f32 %v82, %v85
    %v138 = vrot.slane %v137, 4
    %v139 = vmax.f32 %v137, %v138
    %v140 = vrot.slane %v139, 2
    %v141 = vmax.f32 %v139, %v140
    %v142 = vrot.slane %v141, 1
    %v143 = vmax.f32 %v141, %v142
    %v144 = vmax.f32 %v42, %v45
    %v145 = vrot.slane %v144, 4
    %v146 = vmax.f32 %v144, %v145
    %v147 = vrot.slane %v146, 2
    %v148 = vmax.f32 %v146, %v147
    %v149 = vrot.slane %v148, 1
    %v150 = vmax.f32 %v148, %v149
    %v151 = vmax.f32 %v48, %v51
    %v152 = vrot.slane %v151, 4
    %v153 = vmax.f32 %v151, %v152
    %v154 = vrot.slane %v153, 2
    %v155 = vmax.f32 %v153, %v154
    %v156 = vrot.slane %v155, 1
    %v157 = vmax.f32 %v155, %v156
    %v158 = vmax.f32 %v54, %v57
    %v159 = vrot.slane %v158, 4
    %v160 = vmax.f32 %v158, %v159
    %v161 = vrot.slane %v160, 2
    %v162 = vmax.f32 %v160, %v161
    %v163 = vrot.slane %v162, 1
    %v164 = vmax.f32 %v162, %v163
    %v165 = vmax.f32 %v60, %v63
    %v166 = vrot.slane %v165, 4
    %v167 = vmax.f32 %v165, %v166
    %v168 = vrot.slane %v167, 2
    %v169 = vmax.f32 %v167, %v168
    %v170 = vrot.slane %v169, 1
    %v171 = vmax.f32 %v169, %v170
    %v172 = vmax.f32 %v66, %v69
    %v173 = vrot.slane %v172, 4
    %v174 = vmax.f32 %v172, %v173
    %v175 = vrot.slane %v174, 2
    %v176 = vmax.f32 %v174, %v175
    %v177 = vrot.slane %v176, 1
    %v178 = vmax.f32 %v176, %v177
    %v179 = vmax.f32 %v72, %v75
    %v180 = vrot.slane %v179, 4
    %v181 = vmax.f32 %v179, %v180
    %v182 = vrot.slane %v181, 2
    %v183 = vmax.f32 %v181, %v182
    %v184 = vrot.slane %v183, 1
    %v185 = vmax.f32 %v183, %v184
    %v186 = vmax.f32 %v78, %v81
    %v187 = vrot.slane %v186, 4
    %v188 = vmax.f32 %v186, %v187
    %v189 = vrot.slane %v188, 2
    %v190 = vmax.f32 %v188, %v189
    %v191 = vrot.slane %v190, 1
    %v192 = vmax.f32 %v190, %v191
    %v193 = vmax.f32 %v84, %v87
    %v194 = vrot.slane %v193, 4
    %v195 = vmax.f32 %v193, %v194
    %v196 = vrot.slane %v195, 2
    %v197 = vmax.f32 %v195, %v196
    %v198 = vrot.slane %v197, 1
    %v199 = vmax.f32 %v197, %v198
    %v200 = vsub.f32 %v42, %v150
    %v201 = vsub.f32 %v45, %v150
    %v202 = vsub.f32 %v48, %v157
    %v203 = vsub.f32 %v51, %v157
    %v204 = vsub.f32 %v54, %v164
    %v205 = vsub.f32 %v57, %v164
    %v206 = vsub.f32 %v60, %v171
    %v207 = vsub.f32 %v63, %v171
    %v208 = vsub.f32 %v66, %v178
    %v209 = vsub.f32 %v69, %v178
    %v210 = vsub.f32 %v72, %v185
    %v211 = vsub.f32 %v75, %v185
    %v212 = vsub.f32 %v78, %v192
    %v213 = vsub.f32 %v81, %v192
    %v214 = vsub.f32 %v84, %v199
    %v215 = vsub.f32 %v87, %v199
    %v216 = vmul.f32 %v200, 1.442695
    %v217 = vpow.pop %v216
    %v218 = vmul.f32 %v201, 1.442695
    %v219 = vpow.pop %v218
    %v220 = vmul.f32 %v202, 1.442695
    %v221 = vpow.pop %v220
    %v222 = vmul.f32 %v203, 1.442695
    %v223 = vpow.pop %v222
    %v224 = vmul.f32 %v204, 1.442695
    %v225 = vpow.pop %v224
    %v226 = vmul.f32 %v205, 1.442695
    %v227 = vpow.pop %v226
    %v228 = vmul.f32 %v206, 1.442695
    %v229 = vpow.pop %v228
    %v230 = vmul.f32 %v207, 1.442695
    %v231 = vpow.pop %v230
    %v232 = vmul.f32 %v208, 1.442695
    %v233 = vpow.pop %v232
    %v234 = vmul.f32 %v209, 1.442695
    %v235 = vpow.pop %v234
    %v236 = vmul.f32 %v210, 1.442695
    %v237 = vpow.pop %v236
    %v238 = vmul.f32 %v211, 1.442695
    %v239 = vpow.pop %v238
    %v240 = vmul.f32 %v212, 1.442695
    %v241 = vpow.pop %v240
    %v242 = vmul.f32 %v213, 1.442695
    %v243 = vpow.pop %v242
    %v244 = vmul.f32 %v214, 1.442695
    %v245 = vpow.pop %v244
    %v246 = vmul.f32 %v215, 1.442695
    %v247 = vpow.pop %v246
    %v248 = vsel %vm39, %v94, -inf
    %249 = vmax.xlane.f32.xlu0 %v248
    %v250 = vpop.xlane.xlu0 %249
    %v251 = vsel %vm39, %v101, -inf
    %252 = vmax.xlane.f32.xlu0 %v251
    %v253 = vpop.xlane.xlu0 %252
    %v254 = vsel %vm39, %v108, -inf
    %255 = vmax.xlane.f32.xlu0 %v254
    %v256 = vpop.xlane.xlu0 %255
    %v257 = vsel %vm39, %v115, -inf
    %258 = vmax.xlane.f32.xlu0 %v257
    %v259 = vpop.xlane.xlu0 %258
    %v260 = vsel %vm39, %v122, -inf
    %261 = vmax.xlane.f32.xlu0 %v260
    %v262 = vpop.xlane.xlu0 %261
    %v263 = vsel %vm39, %v129, -inf
    %264 = vmax.xlane.f32.xlu0 %v263
    %v265 = vpop.xlane.xlu0 %264
    %v266 = vsel %vm39, %v136, -inf
    %267 = vmax.xlane.f32.xlu0 %v266
    %v268 = vpop.xlane.xlu0 %267
    %v269 = vsel %vm39, %v143, -inf
    %270 = vmax.xlane.f32.xlu0 %v269
    %v271 = vpop.xlane.xlu0 %270
    %v272 = vsub.f32 %v94, %v250
    %v273 = vsub.f32 %v101, %v253
    %v274 = vsub.f32 %v108, %v256
    %v275 = vsub.f32 %v115, %v259
    %v276 = vsub.f32 %v122, %v262
    %v277 = vsub.f32 %v129, %v265
    %v278 = vsub.f32 %v136, %v268
    %v279 = vsub.f32 %v143, %v271
    %v280 = vmul.f32 %v272, 1.442695
    %v281 = vpow.pop %v280
    %v282 = vmul.f32 %v273, 1.442695
    %v283 = vpow.pop %v282
    %v284 = vmul.f32 %v274, 1.442695
    %v285 = vpow.pop %v284
    %v286 = vmul.f32 %v275, 1.442695
    %v287 = vpow.pop %v286
    %v288 = vmul.f32 %v276, 1.442695
    %v289 = vpow.pop %v288
    %v290 = vmul.f32 %v277, 1.442695
    %v291 = vpow.pop %v290
    %v292 = vmul.f32 %v278, 1.442695
    %v293 = vpow.pop %v292
    %v294 = vmul.f32 %v279, 1.442695
    %v295 = vpow.pop %v294
    %v296 = vadd.f32 %v217, %v219
    %v297 = vrot.slane %v296, 4
    %v298 = vadd.f32 %v296, %v297
    %v299 = vrot.slane %v298, 2
    %v300 = vadd.f32 %v298, %v299
    %v301 = vrot.slane %v300, 1
    %v302 = vadd.f32 %v300, %v301
    %v303 = vadd.f32 %v221, %v223
    %v304 = vrot.slane %v303, 4
    %v305 = vadd.f32 %v303, %v304
    %v306 = vrot.slane %v305, 2
    %v307 = vadd.f32 %v305, %v306
    %v308 = vrot.slane %v307, 1
    %v309 = vadd.f32 %v307, %v308
    %v310 = vadd.f32 %v225, %v227
    %v311 = vrot.slane %v310, 4
    %v312 = vadd.f32 %v310, %v311
    %v313 = vrot.slane %v312, 2
    %v314 = vadd.f32 %v312, %v313
    %v315 = vrot.slane %v314, 1
    %v316 = vadd.f32 %v314, %v315
    %v317 = vadd.f32 %v229, %v231
    %v318 = vrot.slane %v317, 4
    %v319 = vadd.f32 %v317, %v318
    %v320 = vrot.slane %v319, 2
    %v321 = vadd.f32 %v319, %v320
    %v322 = vrot.slane %v321, 1
    %v323 = vadd.f32 %v321, %v322
    %v324 = vadd.f32 %v233, %v235
    %v325 = vrot.slane %v324, 4
    %v326 = vadd.f32 %v324, %v325
    %v327 = vrot.slane %v326, 2
    %v328 = vadd.f32 %v326, %v327
    %v329 = vrot.slane %v328, 1
    %v330 = vadd.f32 %v328, %v329
    %v331 = vadd.f32 %v237, %v239
    %v332 = vrot.slane %v331, 4
    %v333 = vadd.f32 %v331, %v332
    %v334 = vrot.slane %v333, 2
    %v335 = vadd.f32 %v333, %v334
    %v336 = vrot.slane %v335, 1
    %v337 = vadd.f32 %v335, %v336
    %v338 = vadd.f32 %v241, %v243
    %v339 = vrot.slane %v338, 4
    %v340 = vadd.f32 %v338, %v339
    %v341 = vrot.slane %v340, 2
    %v342 = vadd.f32 %v340, %v341
    %v343 = vrot.slane %v342, 1
    %v344 = vadd.f32 %v342, %v343
    %v345 = vadd.f32 %v245, %v247
    %v346 = vrot.slane %v345, 4
    %v347 = vadd.f32 %v345, %v346
    %v348 = vrot.slane %v347, 2
    %v349 = vadd.f32 %v347, %v348
    %v350 = vrot.slane %v349, 1
    %v351 = vadd.f32 %v349, %v350
    %v352 = vsel %vm39, %v281, 0.0
    %353 = vadd.xlane.f32.xlu0 %v352
    %v354 = vpop.xlane.xlu0 %353
    %v355 = vsel %vm39, %v283, 0.0
    %356 = vadd.xlane.f32.xlu0 %v355
    %v357 = vpop.xlane.xlu0 %356
    %v358 = vsel %vm39, %v285, 0.0
    %359 = vadd.xlane.f32.xlu0 %v358
    %v360 = vpop.xlane.xlu0 %359
    %v361 = vsel %vm39, %v287, 0.0
    %362 = vadd.xlane.f32.xlu0 %v361
    %v363 = vpop.xlane.xlu0 %362
    %v364 = vsel %vm39, %v289, 0.0
    %365 = vadd.xlane.f32.xlu0 %v364
    %v366 = vpop.xlane.xlu0 %365
    %v367 = vsel %vm39, %v291, 0.0
    %368 = vadd.xlane.f32.xlu0 %v367
    %v369 = vpop.xlane.xlu0 %368
    %v370 = vsel %vm39, %v293, 0.0
    %371 = vadd.xlane.f32.xlu0 %v370
    %v372 = vpop.xlane.xlu0 %371
    %v373 = vsel %vm39, %v295, 0.0
    %374 = vadd.xlane.f32.xlu0 %v373
    %v375 = vpop.xlane.xlu0 %374
    %v376 = vmul.f32 %v302, %v354
    %v377 = vmul.f32 %v309, %v357
    %v378 = vmul.f32 %v316, %v360
    %v379 = vmul.f32 %v323, %v363
    %v380 = vmul.f32 %v330, %v366
    %v381 = vmul.f32 %v337, %v369
    %v382 = vmul.f32 %v344, %v372
    %v383 = vmul.f32 %v351, %v375
    %v384 = vrcp.pop %v376
    %v385 = vmul.f32 1.0, %v384
    %v386 = vrcp.pop %v377
    %v387 = vmul.f32 1.0, %v386
    %v388 = vrcp.pop %v378
    %v389 = vmul.f32 1.0, %v388
    %v390 = vrcp.pop %v379
    %v391 = vmul.f32 1.0, %v390
    %v392 = vrcp.pop %v380
    %v393 = vmul.f32 1.0, %v392
    %v394 = vrcp.pop %v381
    %v395 = vmul.f32 1.0, %v394
    %v396 = vrcp.pop %v382
    %v397 = vmul.f32 1.0, %v396
    %v398 = vrcp.pop %v383
    %v399 = vmul.f32 1.0, %v398
    %v400 = vmul.f32 %v217, %v281
    %v401 = vmul.f32 %v219, %v281
    %v402 = vmul.f32 %v221, %v283
    %v403 = vmul.f32 %v223, %v283
    %v404 = vmul.f32 %v225, %v285
    %v405 = vmul.f32 %v227, %v285
    %v406 = vmul.f32 %v229, %v287
    %v407 = vmul.f32 %v231, %v287
    %v408 = vmul.f32 %v233, %v289
    %v409 = vmul.f32 %v235, %v289
    %v410 = vmul.f32 %v237, %v291
    %v411 = vmul.f32 %v239, %v291
    %v412 = vmul.f32 %v241, %v293
    %v413 = vmul.f32 %v243, %v293
    %v414 = vmul.f32 %v245, %v295
    %v415 = vmul.f32 %v247, %v295
    %v416 = vmul.f32 %v400, %v385
    %v417 = vmul.f32 %v401, %v385
    %v418 = vmul.f32 %v402, %v387
    %v419 = vmul.f32 %v403, %v387
    %v420 = vmul.f32 %v404, %v389
    %v421 = vmul.f32 %v405, %v389
    %v422 = vmul.f32 %v406, %v391
    %v423 = vmul.f32 %v407, %v391
    %v424 = vmul.f32 %v408, %v393
    %v425 = vmul.f32 %v409, %v393
    %v426 = vmul.f32 %v410, %v395
    %v427 = vmul.f32 %v411, %v395
    %v428 = vmul.f32 %v412, %v397
    %v429 = vmul.f32 %v413, %v397
    %v430 = vmul.f32 %v414, %v399
    %v431 = vmul.f32 %v415, %v399
    %432 = vst.msk [vmem:[#allocation5] sm:$0xff] %vm39, %v416
    %433 = vst.msk [vmem:[#allocation5 + $0x8] sm:$0xff] %vm39, %v417
    %434 = vst.msk [vmem:[#allocation5 + $0x10] sm:$0xff] %vm39, %v418
    %435 = vst.msk [vmem:[#allocation5 + $0x18] sm:$0xff] %vm39, %v419
    %436 = vst.msk [vmem:[#allocation5 + $0x20] sm:$0xff] %vm39, %v420
    %437 = vst.msk [vmem:[#allocation5 + $0x28] sm:$0xff] %vm39, %v421
    %438 = vst.msk [vmem:[#allocation5 + $0x30] sm:$0xff] %vm39, %v422
    %439 = vst.msk [vmem:[#allocation5 + $0x38] sm:$0xff] %vm39, %v423
    %440 = vst.msk [vmem:[#allocation5 + $0x40] sm:$0xff] %vm39, %v424
    %441 = vst.msk [vmem:[#allocation5 + $0x48] sm:$0xff] %vm39, %v425
    %442 = vst.msk [vmem:[#allocation5 + $0x50] sm:$0xff] %vm39, %v426
    %443 = vst.msk [vmem:[#allocation5 + $0x58] sm:$0xff] %vm39, %v427
    %444 = vst.msk [vmem:[#allocation5 + $0x60] sm:$0xff] %vm39, %v428
    %445 = vst.msk [vmem:[#allocation5 + $0x68] sm:$0xff] %vm39, %v429
    %446 = vst.msk [vmem:[#allocation5 + $0x70] sm:$0xff] %vm39, %v430
    %447 = vst.msk [vmem:[#allocation5 + $0x78] sm:$0xff] %vm39, %v431
    // Predicated region
    $region10: #{tpu_custom_call.1} parent=1 // pred_check
      _
    $region11: #{tpu_custom_call.1} parent=1 // pred_check_branch
      %449 = sbr.rel (0) target = $region13
    $region12: #{tpu_custom_call.1} parent=1 // pred_region
      %s451 = ssub.s32 2048, 2048
      %452 = vsyncadd [#allocation4], %s451
      %s453 = sshll.u32 [#allocation5], 4
      %s454 = int_to_ptr.vmem [resolvable:$true] %s453
      %459 = dma.vmem_to_hbm [thread:$0]  %s454, 2048, %s1, [#allocation4], 128, 128, 8
    $region13: #{tpu_custom_call.1} parent=1 // pred_fallthru
      _
    // Predicated region
    $region14: #{tpu_custom_call.1} parent=1 // pred_check
      _
    $region15: #{tpu_custom_call.1} parent=1 // pred_check_branch
      %461 = sbr.rel (0) target = $region17
    $region16: #{tpu_custom_call.1} parent=1 // pred_region
      %462 = dma.done [#allocation4], 2048
    $region17: #{tpu_custom_call.1} parent=1 // pred_fallthru
      _
    %463 = vsyncpa [#allocation3], 1
    %464 = vsyncpa [#allocation4], 1

</llo_original>
